<compile_context>
chip_gen: v7x
topology: tpu7x:2x2x1
jax: 0.10.0
libtpu: 0.0.40
codegen_flags: <defaults>
</compile_context>

<pallas_src>
import functools

import jax
import jax.numpy as jnp
from jax import lax
from jax.experimental import pallas as pl
from jax.experimental.pallas import tpu as pltpu


def _tgcn_gconv_kernel(x_ref, h_ref, wx_ref, wh_ref, b_ref, o_ref,
                       q_scr, d_scr, *, lane_dense):
    # x_ref: (Bt, N, N) bf16   h_ref: (Bt, N, G) bf16
    # wx_ref: (N, O) bf16      wh_ref: (G, O) bf16      b_ref: (1, O) f32
    # o_ref: (Bt, N*O) f32 (lane-dense) or (Bt, N, O) f32 (fallback)
    # q_scr: (Bt*N, O) f32     d_scr: (Bt*N, 1) f32
    bt, n, _ = x_ref.shape
    g = h_ref.shape[2]
    od = wx_ref.shape[1]
    no = n * od

    # ---- Stage 1: shared-weight GEMMs stacked over the whole batch block ----
    # (Bt*N rows feed the MXU in one go; bf16 operands, f32 accumulation.)
    x2d = x_ref[...].reshape(bt * n, n)    # layout-trivial (n % 8 == 0 or bt == 1)
    h2d = h_ref[...].reshape(bt * n, g)
    p = jnp.dot(x2d, wx_ref[...], preferred_element_type=jnp.float32)
    p = p + jnp.dot(h2d, wh_ref[...], preferred_element_type=jnp.float32)

    # d = (rowsum(A) + 1)^(-1/2), inf -> 0 (the +1 folds in the self loop); f32.
    row_sum = jnp.sum(x2d, axis=1, keepdims=True, dtype=jnp.float32) + 1.0
    d = lax.rsqrt(row_sum)
    d = jnp.where(jnp.isinf(d), jnp.zeros_like(d), d)     # matches torch inf->0

    # Park Q = D*P and d in VMEM scratch so the per-batch loop below reads Refs
    # (bounded live ranges) instead of slicing a live full-block value.
    q_scr[...] = d * p                                     # (Bt*N, O) f32
    d_scr[...] = d                                         # (Bt*N, 1) f32

    bias_nd = jnp.broadcast_to(b_ref[...], (n, od))        # hoisted out of loop

    if lane_dense:
        # Constants for the (N,O) -> (1, N*O) lane-dense scatter, built on-chip.
        # flat index j -> (row = j // O, col = j % O); j//O, j%O are derived with
        # an exact float trick (no vector integer div/rem needed).
        jj = lax.broadcasted_iota(jnp.int32, (1, no), 1)
        jdiv = jnp.floor((jj.astype(jnp.float32) + 0.5) *
                         (1.0 / od)).astype(jnp.int32)                 # j // O
        jmod = jj - jdiv * od                                          # j %  O
        gmat = (jmod == lax.broadcasted_iota(jnp.int32, (od, no), 0)
                ).astype(jnp.float32)                                  # (O, N*O)
        rowmask = (jdiv == lax.broadcasted_iota(jnp.int32, (n, no), 0)
                   ).astype(jnp.float32)                               # (N, N*O)

    # ---- Stage 2: per-batch  Y_b = d_b * (A_b^T q_b + q_b) + bias ----
    def body(b, carry):
        row0 = b * n
        xb = x_ref[b]                                  # (N, N)  bf16
        qb = q_scr[pl.ds(row0, n), :]                  # (N, O)  f32
        db = d_scr[pl.ds(row0, n), :]                  # (N, 1)  f32
        # A_b^T q_b with the transpose folded into the contraction.
        # TODO(synk): for N >= ~512 check the bundle for an (N,N) vxpose on the
        # adjacency operand; if present, contract on the (N,O) side instead and
        # fold the fixup into the lane-dense scatter below.
        r = lax.dot_general(
            xb, qb.astype(xb.dtype),
            dimension_numbers=(((0,), (0,)), ((), ())),
            preferred_element_type=jnp.float32)        # (N, O) f32
        y = db * (r + qb) + bias_nd                    # (N, O) f32
        if lane_dense:
            # scatter y[n, o] -> flat[n*O + o]: selection matmul + row mask +
            # sublane reduce (exact selection; bias already folded into y).
            ym = jnp.dot(y, gmat, preferred_element_type=jnp.float32)  # (N, N*O)
            yf = jnp.sum(ym * rowmask, axis=0, keepdims=True)          # (1, N*O)
            o_ref[pl.ds(b, 1), :] = yf.astype(o_ref.dtype)
        else:
            o_ref[b] = y.astype(o_ref.dtype)
        return carry

    lax.fori_loop(0, bt, body, 0, unroll=bt <= 8)


def _round_up(x, m):
    return ((x + m - 1) // m) * m


def _vmem_capacity_bytes():
    try:
        return int(pltpu.get_tpu_info().vmem_capacity_bytes)
    except Exception:
        return 64 << 20            # assume the smallest (v7x-like) capacity


def _choose_batch_block(batch, n, g, o, lane_dense):
    """Batches per grid step, sized by a VMEM budget (not by MXU-M fill)."""
    if batch <= 1:
        return 1
    if n % 8:
        return 1                   # keep the stacked (Bt*N, .) reshapes layout-trivial
    # Per-batch VMEM bytes (lane-padded): bf16 in blocks (double-buffered),
    # f32 out rows (double-buffered), f32 q/d scratch (single-buffered).
    n_l, g_l, o_l = _round_up(n, 128), _round_up(g, 128), _round_up(o, 128)
    out_row = _round_up(n * o, 128) if lane_dense else n * o_l
    per_b = (2 * 2 * (n * n_l + n * g_l)       # x + h blocks, bf16, double-buffered
             + 2 * 4 * out_row                 # output rows, f32, double-buffered
             + 4 * n * (o_l + 128))            # q + d scratch, f32 (lane padded)
    vmem_cap = _vmem_capacity_bytes()
    budget = min(vmem_cap // 4, 24 << 20)      # headroom for constants / transients
    bt = max(1, min(batch, budget // max(per_b, 1)))
    # ~512-2048 stacked rows per step already amortize the ~0.35us/step overhead
    # and keep the DMA pipeline deep; taller blocks only delay pipeline start.
    bt = min(bt, max(1, 2048 // max(n, 1)))
    # TODO(synk): on v7x (2 TCs) prefer an even number of grid steps when B/bt > 1.
    return max(1, bt)


def tgcn_graph_convolution(inputs, hidden_state, weights, biases):
    """inputs: (B, N, N), hidden_state: (B, N*G), weights: (N+G, O), biases: (O,)"""
    B, N, F = inputs.shape
    assert F == N, "laplacian-with-self-loop requires square per-batch matrices"
    O = weights.shape[1]
    G = weights.shape[0] - N

    # bf16 operands for the HBM streams / MXU; accumulation & epilogue stay f32.
    x = inputs.astype(jnp.bfloat16)
    h = hidden_state.reshape(B, N, G).astype(jnp.bfloat16)
    wx = weights[:N].astype(jnp.bfloat16)                 # applies to the A part
    wh = weights[N:].astype(jnp.bfloat16)                 # applies to the H part
    b2 = biases.reshape(1, O).astype(jnp.float32)

    # Lane-dense output rows (full-lane stores) when N*O is 128-aligned and the
    # per-batch scatter intermediate (N, N*O) stays small.
    lane_dense = (N * O) % 128 == 0 and N * (N * O) * 4 <= (1 << 20)

    bt = _choose_batch_block(B, N, G, O, lane_dense)
    n_steps = pl.cdiv(B, bt)
    b_pad = n_steps * bt
    if b_pad != B:                 # pad instead of shrinking bt to a divisor of B
        x = jnp.pad(x, ((0, b_pad - B), (0, 0), (0, 0)))
        h = jnp.pad(h, ((0, b_pad - B), (0, 0), (0, 0)))

    if lane_dense:
        out_shape = jax.ShapeDtypeStruct((b_pad, N * O), jnp.float32)
        out_spec = pl.BlockSpec((bt, N * O), lambda i: (i, 0))
    else:
        out_shape = jax.ShapeDtypeStruct((b_pad, N, O), jnp.float32)
        out_spec = pl.BlockSpec((bt, N, O), lambda i: (i, 0, 0))

    vmem_cap = _vmem_capacity_bytes()
    out = pl.pallas_call(
        functools.partial(_tgcn_gconv_kernel, lane_dense=lane_dense),
        out_shape=out_shape,
        grid_spec=pltpu.PrefetchScalarGridSpec(
            num_scalar_prefetch=0,
            grid=(n_steps,),
            in_specs=[
                pl.BlockSpec((bt, N, N), lambda i: (i, 0, 0)),   # adjacency block
                pl.BlockSpec((bt, N, G), lambda i: (i, 0, 0)),   # hidden block
                pl.BlockSpec((N, O), lambda i: (0, 0)),          # W[:N]  (shared)
                pl.BlockSpec((G, O), lambda i: (0, 0)),          # W[N:]  (shared)
                pl.BlockSpec((1, O), lambda i: (0, 0)),          # bias   (shared)
            ],
            out_specs=out_spec,
            scratch_shapes=[
                pltpu.VMEM((bt * N, O), jnp.float32),            # Q = D P
                pltpu.VMEM((bt * N, 1), jnp.float32),            # d
            ],
        ),
        compiler_params=pltpu.CompilerParams(
            dimension_semantics=("parallel",),
            vmem_limit_bytes=int(min(vmem_cap // 2, 64 << 20)),
        ),
    )(x, h, wx, wh, b2)

    out = out[:B]
    if not lane_dense:
        out = out.reshape(B, N * O)
    return out


def _reference(inputs, hidden_state, weights, biases):
    """Pure-JAX (f32) replica of the PyTorch forward for verification."""
    B, N, _ = inputs.shape
    O = weights.shape[1]
    G = weights.shape[0] - N
    m = inputs + jnp.eye(N, dtype=inputs.dtype)[None]
    row_sum = m.sum(axis=2)
    d = row_sum ** -0.5
    d = jnp.where(jnp.isinf(d), 0.0, d)
    lap = d[:, :, None] * jnp.swapaxes(m, 1, 2) * d[:, None, :]
    hidden = hidden_state.reshape(B, N, G)
    concat = jnp.concatenate([inputs, hidden], axis=2)
    a = jnp.einsum('bnc,bck->bnk', lap, concat)
    out = a @ weights + biases
    return out.reshape(B, N * O)


if __name__ == "__main__":
    # Small shapes consistent with the module:
    #   batch=2, num_nodes=features=in_feature_dim=16, num_gru_units=32, output_dim=8
    B, N, G, O = 2, 16, 32, 8

    key = jax.random.PRNGKey(0)
    k_in, k_hid, k_w = jax.random.split(key, 3)

    # adjacency-like inputs (non-negative so row sums stay positive, as in real use)
    inputs = jax.random.uniform(k_in, (B, N, N), dtype=jnp.float32)
    hidden_state = jax.random.normal(k_hid, (B, N * G), dtype=jnp.float32)

    # deterministic parameter init mirroring reset_parameters():
    #   xavier_uniform_ on weights (fan_in = G+N, fan_out = O), bias = 0.0
    fan_in, fan_out = G + N, O
    bound = (6.0 / (fan_in + fan_out)) ** 0.5
    weights = jax.random.uniform(k_w, (G + N, O), minval=-bound, maxval=bound,
                                 dtype=jnp.float32)
    biases = jnp.zeros((O,), dtype=jnp.float32)  # bias_init_value = 0.0

    out = tgcn_graph_convolution(inputs, hidden_state, weights, biases)
    out = jax.block_until_ready(out)

    ref = _reference(inputs, hidden_state, weights, biases)
    assert out.shape == (B, N * O)
    # bf16 MXU operands (f32 accumulation) vs the all-f32 reference -> loose tol.
    assert jnp.allclose(out, ref, atol=5e-2, rtol=5e-2), "mismatch vs reference"

    print("KERNEL_OK")
</pallas_src>

<mosaic_0001>
module attributes {stable_mosaic.version = 11 : i64} {
  func.func @_tgcn_gconv_kernel(%arg0: i32, %arg1: memref<2x16x16xbf16, #tpu.memory_space<vmem>>, %arg2: memref<2x16x32xbf16, #tpu.memory_space<vmem>>, %arg3: memref<16x8xbf16, #tpu.memory_space<vmem>>, %arg4: memref<32x8xbf16, #tpu.memory_space<vmem>>, %arg5: memref<1x8xf32, #tpu.memory_space<vmem>>, %arg6: memref<2x128xf32, #tpu.memory_space<vmem>>, %arg7: memref<32x8xf32, #tpu.memory_space<vmem>>, %arg8: memref<32x1xf32, #tpu.memory_space<vmem>>) attributes {dimension_semantics = [#tpu.dimension_semantics<parallel>], iteration_bounds = array<i64: 1>, scalar_prefetch = 0 : i64, scratch_operands = 2 : i64, tpu.core_type = #tpu.core_type<tc>, window_params = [{transform_indices = @transform_0, window_bounds = array<i64: 2, 16, 16>}, {transform_indices = @transform_1, window_bounds = array<i64: 2, 16, 32>}, {pipeline_mode = #tpu.pipeline_mode<synchronous>, transform_indices = @transform_2, window_bounds = array<i64: 16, 8>}, {pipeline_mode = #tpu.pipeline_mode<synchronous>, transform_indices = @transform_3, window_bounds = array<i64: 32, 8>}, {pipeline_mode = #tpu.pipeline_mode<synchronous>, transform_indices = @transform_4, window_bounds = array<i64: 1, 8>}, {transform_indices = @transform_5, window_bounds = array<i64: 2, 128>}]} {
    %c0 = arith.constant 0 : index
    %c0_0 = arith.constant 0 : index
    %c0_1 = arith.constant 0 : index
    %0 = vector.load %arg1[%c0, %c0_0, %c0_1] : memref<2x16x16xbf16, #tpu.memory_space<vmem>>, vector<2x16x16xbf16>
    %1 = vector.shape_cast %0 : vector<2x16x16xbf16> to vector<32x16xbf16>
    %c0_2 = arith.constant 0 : index
    %c0_3 = arith.constant 0 : index
    %c0_4 = arith.constant 0 : index
    %2 = vector.load %arg2[%c0_2, %c0_3, %c0_4] : memref<2x16x32xbf16, #tpu.memory_space<vmem>>, vector<2x16x32xbf16>
    %3 = vector.shape_cast %2 : vector<2x16x32xbf16> to vector<32x32xbf16>
    %c0_5 = arith.constant 0 : index
    %c0_6 = arith.constant 0 : index
    %4 = vector.load %arg3[%c0_5, %c0_6] : memref<16x8xbf16, #tpu.memory_space<vmem>>, vector<16x8xbf16>
    %cst = arith.constant dense<0.000000e+00> : vector<32x8xf32>
    %5 = tpu.matmul %1, %4, %cst {dimension_numbers = #tpu.dot_dimension_numbers<[1], [0], [0], [1], [0, 0, 1, 1], [], []>} : vector<32x16xbf16>, vector<16x8xbf16>, vector<32x8xf32> -> vector<32x8xf32>
    %c0_7 = arith.constant 0 : index
    %c0_8 = arith.constant 0 : index
    %6 = vector.load %arg4[%c0_7, %c0_8] : memref<32x8xbf16, #tpu.memory_space<vmem>>, vector<32x8xbf16>
    %cst_9 = arith.constant dense<0.000000e+00> : vector<32x8xf32>
    %7 = tpu.matmul %3, %6, %cst_9 {dimension_numbers = #tpu.dot_dimension_numbers<[1], [0], [0], [1], [0, 0, 1, 1], [], []>} : vector<32x32xbf16>, vector<32x8xbf16>, vector<32x8xf32> -> vector<32x8xf32>
    %8 = arith.addf %5, %7 : vector<32x8xf32>
    %9 = arith.extf %1 : vector<32x16xbf16> to vector<32x16xf32>
    %cst_10 = arith.constant dense<0.000000e+00> : vector<32xf32>
    %10 = vector.multi_reduction <add>, %9, %cst_10 [1] : vector<32x16xf32> to vector<32xf32>
    %11 = vector.shape_cast %10 : vector<32xf32> to vector<32x1xf32>
    %cst_11 = arith.constant 1.000000e+00 : f32
    %12 = vector.broadcast %cst_11 : f32 to vector<32x1xf32>
    %13 = arith.addf %11, %12 : vector<32x1xf32>
    %14 = math.rsqrt %13 : vector<32x1xf32>
    %15 = math.absf %14 : vector<32x1xf32>
    %cst_12 = arith.constant 0x7F800000 : f32
    %16 = vector.broadcast %cst_12 : f32 to vector<32x1xf32>
    %17 = arith.cmpf oeq, %15, %16 : vector<32x1xf32>
    %cst_13 = arith.constant 0.000000e+00 : f32
    %18 = vector.broadcast %cst_13 : f32 to vector<32x1xf32>
    %19 = arith.select %17, %18, %14 : vector<32x1xi1>, vector<32x1xf32>
    %20 = vector.broadcast %19 : vector<32x1xf32> to vector<32x8xf32>
    %21 = arith.mulf %20, %8 : vector<32x8xf32>
    %c0_14 = arith.constant 0 : index
    %c0_15 = arith.constant 0 : index
    %22 = vector.load %arg7[%c0_14, %c0_15] : memref<32x8xf32, #tpu.memory_space<vmem>>, vector<32x8xf32>
    tpu.vector_store %arg7[%c0_14, %c0_15], %21 {strides = array<i32>} : memref<32x8xf32, #tpu.memory_space<vmem>>, vector<32x8xf32>,
    %c0_16 = arith.constant 0 : index
    %c0_17 = arith.constant 0 : index
    %23 = vector.load %arg8[%c0_16, %c0_17] : memref<32x1xf32, #tpu.memory_space<vmem>>, vector<32x1xf32>
    tpu.vector_store %arg8[%c0_16, %c0_17], %19 {strides = array<i32>} : memref<32x1xf32, #tpu.memory_space<vmem>>, vector<32x1xf32>,
    %c0_18 = arith.constant 0 : index
    %c0_19 = arith.constant 0 : index
    %24 = vector.load %arg5[%c0_18, %c0_19] : memref<1x8xf32, #tpu.memory_space<vmem>>, vector<1x8xf32>
    %25 = vector.shape_cast %24 : vector<1x8xf32> to vector<1x8xf32>
    %26 = vector.broadcast %25 : vector<1x8xf32> to vector<16x8xf32>
    %27 = tpu.iota {dimensions = array<i32: 1>} : vector<1x128xi32>
    %28 = arith.sitofp %27 : vector<1x128xi32> to vector<1x128xf32>
    %cst_20 = arith.constant 5.000000e-01 : f32
    %29 = vector.broadcast %cst_20 : f32 to vector<1x128xf32>
    %30 = arith.addf %28, %29 : vector<1x128xf32>
    %cst_21 = arith.constant 1.250000e-01 : f32
    %31 = vector.broadcast %cst_21 : f32 to vector<1x128xf32>
    %32 = arith.mulf %30, %31 : vector<1x128xf32>
    %33 = math.floor %32 : vector<1x128xf32>
    %34 = arith.fptosi %33 : vector<1x128xf32> to vector<1x128xi32>
    %c8_i32 = arith.constant 8 : i32
    %35 = vector.broadcast %c8_i32 : i32 to vector<1x128xi32>
    %36 = arith.muli %34, %35 : vector<1x128xi32>
    %37 = arith.subi %27, %36 : vector<1x128xi32>
    %38 = tpu.iota {dimensions = array<i32: 0>} : vector<8x128xi32>
    %39 = vector.broadcast %37 : vector<1x128xi32> to vector<8x128xi32>
    %40 = arith.cmpi eq, %39, %38 : vector<8x128xi32>
    %41 = arith.extui %40 : vector<8x128xi1> to vector<8x128xi32>
    %42 = arith.sitofp %41 : vector<8x128xi32> to vector<8x128xf32>
    %43 = tpu.iota {dimensions = array<i32: 0>} : vector<16x128xi32>
    %44 = vector.broadcast %34 : vector<1x128xi32> to vector<16x128xi32>
    %45 = arith.cmpi eq, %44, %43 : vector<16x128xi32>
    %46 = arith.extui %45 : vector<16x128xi1> to vector<16x128xi32>
    %47 = arith.sitofp %46 : vector<16x128xi32> to vector<16x128xf32>
    %c0_i32 = arith.constant 0 : i32
    %c16_i32 = arith.constant 16 : i32
    %48 = arith.muli %c0_i32, %c16_i32 : i32
    %49 = arith.index_cast %c0_i32 : i32 to index
    %c0_22 = arith.constant 0 : index
    %c0_23 = arith.constant 0 : index
    %50 = vector.load %arg1[%49, %c0_22, %c0_23] : memref<2x16x16xbf16, #tpu.memory_space<vmem>>, vector<1x16x16xbf16>
    %51 = vector.shape_cast %50 : vector<1x16x16xbf16> to vector<16x16xbf16>
    %52 = arith.index_cast %48 : i32 to index
    %c0_24 = arith.constant 0 : index
    %53 = vector.load %arg7[%52, %c0_24] : memref<32x8xf32, #tpu.memory_space<vmem>>, vector<16x8xf32>
    %54 = arith.index_cast %48 : i32 to index
    %c0_25 = arith.constant 0 : index
    %55 = vector.load %arg8[%54, %c0_25] : memref<32x1xf32, #tpu.memory_space<vmem>>, vector<16x1xf32>
    %56 = arith.truncf %53 : vector<16x8xf32> to vector<16x8xbf16>
    %cst_26 = arith.constant dense<0.000000e+00> : vector<16x8xf32>
    %57 = tpu.matmul %51, %56, %cst_26 {dimension_numbers = #tpu.dot_dimension_numbers<[0], [0], [1], [1], [0, 1, 1, 1], [], []>} : vector<16x16xbf16>, vector<16x8xbf16>, vector<16x8xf32> -> vector<16x8xf32>
    %58 = arith.addf %57, %53 : vector<16x8xf32>
    %59 = vector.broadcast %55 : vector<16x1xf32> to vector<16x8xf32>
    %60 = arith.mulf %59, %58 : vector<16x8xf32>
    %61 = arith.addf %60, %26 : vector<16x8xf32>
    %cst_27 = arith.constant dense<0.000000e+00> : vector<16x128xf32>
    %62 = tpu.matmul %61, %42, %cst_27 {dimension_numbers = #tpu.dot_dimension_numbers<[1], [0], [0], [1], [0, 0, 1, 1], [], []>} : vector<16x8xf32>, vector<8x128xf32>, vector<16x128xf32> -> vector<16x128xf32>
    %63 = arith.mulf %62, %47 : vector<16x128xf32>
    %cst_28 = arith.constant dense<0.000000e+00> : vector<128xf32>
    %64 = vector.multi_reduction <add>, %63, %cst_28 [0] : vector<16x128xf32> to vector<128xf32>
    %65 = vector.shape_cast %64 : vector<128xf32> to vector<1x128xf32>
    %66 = arith.index_cast %c0_i32 : i32 to index
    %c0_29 = arith.constant 0 : index
    %67 = vector.load %arg6[%66, %c0_29] : memref<2x128xf32, #tpu.memory_space<vmem>>, vector<1x128xf32>
    tpu.vector_store %arg6[%66, %c0_29], %65 {strides = array<i32>} : memref<2x128xf32, #tpu.memory_space<vmem>>, vector<1x128xf32>,
    %c1_i32 = arith.constant 1 : i32
    %c16_i32_30 = arith.constant 16 : i32
    %68 = arith.muli %c1_i32, %c16_i32_30 : i32
    %69 = arith.index_cast %c1_i32 : i32 to index
    %c0_31 = arith.constant 0 : index
    %c0_32 = arith.constant 0 : index
    %70 = vector.load %arg1[%69, %c0_31, %c0_32] : memref<2x16x16xbf16, #tpu.memory_space<vmem>>, vector<1x16x16xbf16>
    %71 = vector.shape_cast %70 : vector<1x16x16xbf16> to vector<16x16xbf16>
    %72 = arith.index_cast %68 : i32 to index
    %c0_33 = arith.constant 0 : index
    %73 = vector.load %arg7[%72, %c0_33] : memref<32x8xf32, #tpu.memory_space<vmem>>, vector<16x8xf32>
    %74 = arith.index_cast %68 : i32 to index
    %c0_34 = arith.constant 0 : index
    %75 = vector.load %arg8[%74, %c0_34] : memref<32x1xf32, #tpu.memory_space<vmem>>, vector<16x1xf32>
    %76 = arith.truncf %73 : vector<16x8xf32> to vector<16x8xbf16>
    %cst_35 = arith.constant dense<0.000000e+00> : vector<16x8xf32>
    %77 = tpu.matmul %71, %76, %cst_35 {dimension_numbers = #tpu.dot_dimension_numbers<[0], [0], [1], [1], [0, 1, 1, 1], [], []>} : vector<16x16xbf16>, vector<16x8xbf16>, vector<16x8xf32> -> vector<16x8xf32>
    %78 = arith.addf %77, %73 : vector<16x8xf32>
    %79 = vector.broadcast %75 : vector<16x1xf32> to vector<16x8xf32>
    %80 = arith.mulf %79, %78 : vector<16x8xf32>
    %81 = arith.addf %80, %26 : vector<16x8xf32>
    %cst_36 = arith.constant dense<0.000000e+00> : vector<16x128xf32>
    %82 = tpu.matmul %81, %42, %cst_36 {dimension_numbers = #tpu.dot_dimension_numbers<[1], [0], [0], [1], [0, 0, 1, 1], [], []>} : vector<16x8xf32>, vector<8x128xf32>, vector<16x128xf32> -> vector<16x128xf32>
    %83 = arith.mulf %82, %47 : vector<16x128xf32>
    %cst_37 = arith.constant dense<0.000000e+00> : vector<128xf32>
    %84 = vector.multi_reduction <add>, %83, %cst_37 [0] : vector<16x128xf32> to vector<128xf32>
    %85 = vector.shape_cast %84 : vector<128xf32> to vector<1x128xf32>
    %86 = arith.index_cast %c1_i32 : i32 to index
    %c0_38 = arith.constant 0 : index
    %87 = vector.load %arg6[%86, %c0_38] : memref<2x128xf32, #tpu.memory_space<vmem>>, vector<1x128xf32>
    tpu.vector_store %arg6[%86, %c0_38], %85 {strides = array<i32>} : memref<2x128xf32, #tpu.memory_space<vmem>>, vector<1x128xf32>,
    %c2_i32 = arith.constant 2 : i32
    return
  }
  func.func @transform_0(%arg0: i32) -> (i32, i32, i32) {
    %c0_i32 = arith.constant 0 : i32
    %c0_i32_0 = arith.constant 0 : i32
    %c0_i32_1 = arith.constant 0 : i32
    return %arg0, %c0_i32, %c0_i32_0 : i32, i32, i32
  }
  func.func @transform_1(%arg0: i32) -> (i32, i32, i32) {
    %c0_i32 = arith.constant 0 : i32
    %c0_i32_0 = arith.constant 0 : i32
    %c0_i32_1 = arith.constant 0 : i32
    return %arg0, %c0_i32, %c0_i32_0 : i32, i32, i32
  }
  func.func @transform_2(%arg0: i32) -> (i32, i32) {
    %c0_i32 = arith.constant 0 : i32
    %c0_i32_0 = arith.constant 0 : i32
    %c0_i32_1 = arith.constant 0 : i32
    return %c0_i32, %c0_i32_0 : i32, i32
  }
  func.func @transform_3(%arg0: i32) -> (i32, i32) {
    %c0_i32 = arith.constant 0 : i32
    %c0_i32_0 = arith.constant 0 : i32
    %c0_i32_1 = arith.constant 0 : i32
    return %c0_i32, %c0_i32_0 : i32, i32
  }
  func.func @transform_4(%arg0: i32) -> (i32, i32) {
    %c0_i32 = arith.constant 0 : i32
    %c0_i32_0 = arith.constant 0 : i32
    %c0_i32_1 = arith.constant 0 : i32
    return %c0_i32, %c0_i32_0 : i32, i32
  }
  func.func @transform_5(%arg0: i32) -> (i32, i32) {
    %c0_i32 = arith.constant 0 : i32
    %c0_i32_0 = arith.constant 0 : i32
    return %arg0, %c0_i32 : i32, i32
  }
}

</mosaic_0001>

<llo_original>
// kernel: tpu_custom_call.1
$region0: #{tpu_custom_call.1}
  #allocation0 [shape = 'u32[]', space=smem, size = 0x4, offset = 0x4, fixed_abs, tag = 'smem constant byte address 0x4 - core index']
  #allocation1 [shape = 'u32[144,128]{1,0:T(1,128)}', space=vmem, size = 0x12000, scoped, tag = 'internal scratch']
  #allocation2 [shape = 'f32[32,8]{1,0:T(8,128)}', space=vmem, size = 0x4000, scoped, tag = 'scratch operand']
  #allocation3 [shape = 'f32[32,1]{1,0:T(8,128)}', space=vmem, size = 0x4000, scoped, tag = 'scratch operand']
  %s0 = inlined_call_operand.vmem [shape: bf16[2,16,16], index: 0, kind: input, shape index: {}]
  %s1 = inlined_call_operand.vmem [shape: bf16[2,16,32], index: 1, kind: input, shape index: {}]
  %s2 = inlined_call_operand.vmem [shape: bf16[16,8], index: 2, kind: input, shape index: {}]
  %s3 = inlined_call_operand.vmem [shape: bf16[32,8], index: 3, kind: input, shape index: {}]
  %s4 = inlined_call_operand.vmem [shape: f32[1,8], index: 4, kind: input, shape index: {}]
  %s5 = inlined_call_operand.hbm [shape: f32[2,128], index: 5, kind: output, shape index: {}]
  %s6 = sld [smem:[#allocation0]]
  $region30: #{tpu_custom_call.1} parent=0
    _
  %s8 = ssub.s32 1, %s6
  %s9 = scalar_select 0, %s8, %s6
  $region1: #{tpu_custom_call.1} parent=0
    #allocation4 [shape = 'u8[1024]{0}', space=vmem, size = 0x400, scoped, tag = 'output window, operand 0, single buffered']
    #allocation5 [shape = 's32[1]{0}', space=sflag, size = 0x4, scoped, tag = 'scoped memory for tpu_custom_call.1']
    %10 = vsyncpa [#allocation5], 0
    // Predicated region
    $region2: #{tpu_custom_call.1} parent=1 // pred_check
      _
    $region3: #{tpu_custom_call.1} parent=1 // pred_check_branch
      %12 = sbr.rel (0) target = $region5
    $region4: #{tpu_custom_call.1} parent=1 // pred_region
      _
    $region5: #{tpu_custom_call.1} parent=1 // pred_fallthru
      _
    // Predicated region
    $region6: #{tpu_custom_call.1} parent=1 // pred_check
      _
    $region7: #{tpu_custom_call.1} parent=1 // pred_check_branch
      %14 = sbr.rel (0) target = $region9
    $region8: #{tpu_custom_call.1} parent=1 // pred_region
      _
    $region9: #{tpu_custom_call.1} parent=1 // pred_fallthru
      _
    // Predicated region
    $region10: #{tpu_custom_call.1} parent=1 // pred_check
      _
    $region11: #{tpu_custom_call.1} parent=1 // pred_check_branch
      %16 = sbr.rel (0) target = $region13
    $region12: #{tpu_custom_call.1} parent=1 // pred_region
      _
    $region13: #{tpu_custom_call.1} parent=1 // pred_fallthru
      _
    // Predicated region
    $region14: #{tpu_custom_call.1} parent=1 // pred_check
      _
    $region15: #{tpu_custom_call.1} parent=1 // pred_check_branch
      %18 = sbr.rel (0) target = $region17
    $region16: #{tpu_custom_call.1} parent=1 // pred_region
      _
    $region17: #{tpu_custom_call.1} parent=1 // pred_fallthru
      _
    // Predicated region
    $region18: #{tpu_custom_call.1} parent=1 // pred_check
      _
    $region19: #{tpu_custom_call.1} parent=1 // pred_check_branch
      %20 = sbr.rel (0) target = $region21
    $region20: #{tpu_custom_call.1} parent=1 // pred_region
      _
    $region21: #{tpu_custom_call.1} parent=1 // pred_fallthru
      _
    %v22 = vld [vmem:[%s0] sm:$0xf]
    %v23 = vld [vmem:[%s0 + $0x4] sm:$0xf]
    %v24 = vld [vmem:[%s0 + $0x8] sm:$0xf]
    %v25 = vld [vmem:[%s0 + $0xc] sm:$0xf]
    %v26 = vld [vmem:[%s1] sm:$0xf]
    %v27 = vld [vmem:[%s1 + $0x4] sm:$0xf]
    %v28 = vld [vmem:[%s1 + $0x8] sm:$0xf]
    %v29 = vld [vmem:[%s1 + $0xc] sm:$0xf]
    %v30 = vld [vmem:[%s2] sm:$0xf]
    %v31 = vld [vmem:[%s2 + $0x4] sm:$0xf]
    %v32 = vld [vmem:[%s3] sm:$0xf]
    %v33 = vld [vmem:[%s3 + $0x4] sm:$0xf]
    %v34 = vld [vmem:[%s3 + $0x8] sm:$0xf]
    %v35 = vld [vmem:[%s3 + $0xc] sm:$0xf]
    %v40 = vunpack.c.l.b16 %v26
    %v41 = vunpack.c.l.b16 %v27
    %v42 = vunpack.c.l.b16 %v28
    %v43 = vunpack.c.l.b16 %v29
    %v44 = vpack.c.b16 %v41, %v40
    %v45 = vpack.c.b16 %v43, %v42
    %v50 = vunpack.c.l.b16 %v32
    %v51 = vunpack.c.l.b16 %v33
    %v52 = vunpack.c.l.b16 %v34
    %v53 = vunpack.c.l.b16 %v35
    %v54 = vpack.c.b16 %v51, %v50
    %v55 = vpack.c.b16 %v53, %v52
    %vm58 = vcmask 261120
    %v60 = vsel %vm58, %v44, 0
    %v63 = vsel %vm58, %v45, 0
    %65 = vmatprep.subr.bf16.mxu0 0
    %66 = vmatpush1.bf16.msra.mxu0 %v54
    %67 = vmatprep.subr.bf16.mxu0 0
    %68 = vmatpush1.bf16.msra.mxu0 %v55
    %69 = vmatprep.subr.bf16.mxu0 0
    %70 = vmatpush1.bf16.msra.mxu0 0
    %71 = vmatprep.subr.bf16.mxu0 0
    %72 = vmatpush1.bf16.msra.mxu0 0
    %73 = vmatprep.subr.bf16.mxu0 0
    %74 = vmatpush1.bf16.msra.mxu0 0
    %75 = vmatprep.subr.bf16.mxu0 0
    %76 = vmatpush1.bf16.msra.mxu0 0
    %77 = vmatprep.subr.bf16.mxu0 0
    %78 = vmatpush1.bf16.msra.mxu0 0
    %79 = vmatprep.subr.bf16.mxu0 0
    %80 = vmatpush1.bf16.msra.mxu0 0
    %81 = vmatprep.subr.bf16.mxu0 0
    %82 = vmatpush1.bf16.msra.mxu0 0
    %83 = vmatprep.subr.bf16.mxu0 0
    %84 = vmatpush1.bf16.msra.mxu0 0
    %85 = vmatprep.subr.bf16.mxu0 0
    %86 = vmatpush1.bf16.msra.mxu0 0
    %87 = vmatprep.subr.bf16.mxu0 0
    %88 = vmatpush1.bf16.msra.mxu0 0
    %89 = vmatprep.subr.bf16.mxu0 0
    %90 = vmatpush1.bf16.msra.mxu0 0
    %91 = vmatprep.subr.bf16.mxu0 0
    %92 = vmatpush1.bf16.msra.mxu0 0
    %93 = vmatprep.subr.bf16.mxu0 0
    %94 = vmatpush1.bf16.msra.mxu0 0
    %95 = vmatprep.subr.bf16.mxu0 0
    %96 = vmatpush1.bf16.msra.mxu0 0
    %97 = vmatprep.mubr.bf16.mxu0 0
    %98 = vmatmul.mubr.bf16.gmra.mrb[0].mxu0 %v60
    %v99 = vpop.f32.mrb[0].mxu0
    %v100 = vadd.f32 0.0, %v99
    %v101 = vpop.f32.mrb[0].mxu0
    %v102 = vpop.f32.mrb[0].mxu0
    %v103 = vadd.f32 0.0, %v102
    %v104 = vpop.f32.mrb[0].mxu0
    %105 = vmatprep.mubr.bf16.mxu0 0
    %106 = vmatmul.mubr.bf16.gmra.mrb[0].mxu0 %v63
    %v107 = vpop.f32.mrb[0].mxu0
    %v108 = vadd.f32 0.0, %v107
    %v109 = vpop.f32.mrb[0].mxu0
    %v110 = vpop.f32.mrb[0].mxu0
    %v111 = vadd.f32 0.0, %v110
    %v112 = vpop.f32.mrb[0].mxu0
    %113 = vdwg.mxu0
    %v118 = vunpack.c.l.b16 %v22
    %v119 = vunpack.c.l.b16 %v23
    %v120 = vunpack.c.l.b16 %v24
    %v121 = vunpack.c.l.b16 %v25
    %v122 = vpack.c.b16 %v119, %v118
    %v123 = vpack.c.b16 %v121, %v120
    %v126 = vunpack.c.l.b16 %v30
    %v127 = vunpack.c.l.b16 %v31
    %v128 = vpack.c.b16 %v127, %v126
    %vm130 = vcmask 130048
    %v132 = vsel %vm130, %v122, 0
    %v135 = vsel %vm130, %v123, 0
    %137 = vmatprep.subr.bf16.mxu0 0
    %138 = vmatpush1.bf16.msra.mxu0 %v128
    %139 = vmatprep.subr.bf16.mxu0 0
    %140 = vmatpush1.bf16.msra.mxu0 0
    %141 = vmatprep.subr.bf16.mxu0 0
    %142 = vmatpush1.bf16.msra.mxu0 0
    %143 = vmatprep.subr.bf16.mxu0 0
    %144 = vmatpush1.bf16.msra.mxu0 0
    %145 = vmatprep.subr.bf16.mxu0 0
    %146 = vmatpush1.bf16.msra.mxu0 0
    %147 = vmatprep.subr.bf16.mxu0 0
    %148 = vmatpush1.bf16.msra.mxu0 0
    %149 = vmatprep.subr.bf16.mxu0 0
    %150 = vmatpush1.bf16.msra.mxu0 0
    %151 = vmatprep.subr.bf16.mxu0 0
    %152 = vmatpush1.bf16.msra.mxu0 0
    %153 = vmatprep.subr.bf16.mxu0 0
    %154 = vmatpush1.bf16.msra.mxu0 0
    %155 = vmatprep.subr.bf16.mxu0 0
    %156 = vmatpush1.bf16.msra.mxu0 0
    %157 = vmatprep.subr.bf16.mxu0 0
    %158 = vmatpush1.bf16.msra.mxu0 0
    %159 = vmatprep.subr.bf16.mxu0 0
    %160 = vmatpush1.bf16.msra.mxu0 0
    %161 = vmatprep.subr.bf16.mxu0 0
    %162 = vmatpush1.bf16.msra.mxu0 0
    %163 = vmatprep.subr.bf16.mxu0 0
    %164 = vmatpush1.bf16.msra.mxu0 0
    %165 = vmatprep.subr.bf16.mxu0 0
    %166 = vmatpush1.bf16.msra.mxu0 0
    %167 = vmatprep.subr.bf16.mxu0 0
    %168 = vmatpush1.bf16.msra.mxu0 0
    %169 = vmatprep.mubr.bf16.mxu0 0
    %170 = vmatmul.mubr.bf16.gmra.mrb[0].mxu0 %v132
    %v171 = vpop.f32.mrb[0].mxu0
    %v172 = vadd.f32 %v100, %v171
    %v173 = vpop.f32.mrb[0].mxu0
    %v174 = vpop.f32.mrb[0].mxu0
    %v175 = vadd.f32 %v103, %v174
    %v176 = vpop.f32.mrb[0].mxu0
    %177 = vmatprep.mubr.bf16.mxu0 0
    %178 = vmatmul.mubr.bf16.gmra.mrb[0].mxu0 %v135
    %v179 = vpop.f32.mrb[0].mxu0
    %v180 = vadd.f32 %v108, %v179
    %v181 = vpop.f32.mrb[0].mxu0
    %v182 = vpop.f32.mrb[0].mxu0
    %v183 = vadd.f32 %v111, %v182
    %v184 = vpop.f32.mrb[0].mxu0
    %185 = vdwg.mxu0
    %v186 = vunpack.c.l.bf16 %v22
    %v187 = vunpack.c.l.bf16 %v23
    %v188 = vunpack.c.l.bf16 %v24
    %v189 = vunpack.c.l.bf16 %v25
    %v190 = vsel %vm130, %v186, 0.0
    %191 = vadd.xlane.f32.xlu0 %v190
    %v192 = vpop.xlane.xlu0 %191
    %v193 = vsel %vm130, %v187, 0.0
    %194 = vadd.xlane.f32.xlu0 %v193
    %v195 = vpop.xlane.xlu0 %194
    %v196 = vsel %vm130, %v188, 0.0
    %197 = vadd.xlane.f32.xlu0 %v196
    %v198 = vpop.xlane.xlu0 %197
    %v199 = vsel %vm130, %v189, 0.0
    %200 = vadd.xlane.f32.xlu0 %v199
    %v201 = vpop.xlane.xlu0 %200
    %v202 = vadd.f32 %v192, 1.0
    %v203 = vadd.f32 %v195, 1.0
    %v204 = vadd.f32 %v198, 1.0
    %v205 = vadd.f32 %v201, 1.0
    %v206 = vrsqrt.pop %v202
    %v207 = vrsqrt.pop %v203
    %v208 = vrsqrt.pop %v204
    %v209 = vrsqrt.pop %v205
    %v210 = vand.u32 2147483647, %v206
    %v211 = vand.u32 2147483647, %v207
    %v212 = vand.u32 2147483647, %v208
    %v213 = vand.u32 2147483647, %v209
    %vm214 = vcmp.eq.f32.partialorder %v210, inf
    %vm215 = vcmp.eq.f32.partialorder %v211, inf
    %vm216 = vcmp.eq.f32.partialorder %v212, inf
    %vm217 = vcmp.eq.f32.partialorder %v213, inf
    %v218 = vsel %vm214, 0.0, %v206
    %v219 = vsel %vm215, 0.0, %v207
    %v220 = vsel %vm216, 0.0, %v208
    %v221 = vsel %vm217, 0.0, %v209
    %v222 = vmul.f32 %v218, %v172
    %v223 = vmul.f32 %v219, %v175
    %v224 = vmul.f32 %v220, %v180
    %v225 = vmul.f32 %v221, %v183
    %vm226 = vcmask 64512
    %227 = vst.msk [vmem:[#allocation2] sm:$0xff] %vm226, %v222
    %228 = vst.msk [vmem:[#allocation2 + $0x8] sm:$0xff] %vm226, %v223
    %229 = vst.msk [vmem:[#allocation2 + $0x10] sm:$0xff] %vm226, %v224
    %230 = vst.msk [vmem:[#allocation2 + $0x18] sm:$0xff] %vm226, %v225
    %vm231 = vcmask 7168
    %232 = vst.msk [vmem:[#allocation3] sm:$0xff] %vm231, %v218
    %233 = vst.msk [vmem:[#allocation3 + $0x8] sm:$0xff] %vm231, %v219
    %234 = vst.msk [vmem:[#allocation3 + $0x10] sm:$0xff] %vm231, %v220
    %235 = vst.msk [vmem:[#allocation3 + $0x18] sm:$0xff] %vm231, %v221
    %v236 = vld [vmem:[%s4] sm:$0x1]
    %v238 = vlaneseq
    %v239 = vshrl.u32 %v238, 7
    %v240 = vsub.s32 0, %v239
    %v241 = vrot.slane %v236, %v240
    %v243 = vlaneseq
    %v244 = vand.u32 %v243, 127
    %v245 = vcvt.s32.f32 %v244
    %v246 = vadd.f32 %v245, 0.5
    %v247 = vmul.f32 %v246, 0.125
    %v248 = vfloor.f32 %v247
    %v249 = vcvt.f32.s32.to.zero.pseudo %v248
    %v250 = vmul.u32 %v249, 8
    %v251 = vsub.s32 %v244, %v250
    %v252 = vlaneseq
    %v253 = vshrl.u32 %v252, 7
    %vm254 = vcmp.eq.s32.totalorder %v251, %v253
    %v255 = vsel %vm254, 1, 0
    %v256 = vcvt.s32.f32 %v255
    %v257 = vadd.s32 %v253, 8
    %vm258 = vcmp.eq.s32.totalorder %v249, %v253
    %vm259 = vcmp.eq.s32.totalorder %v249, %v257
    %v260 = vsel %vm258, 1, 0
    %v261 = vsel %vm259, 1, 0
    %v262 = vcvt.s32.f32 %v260
    %v263 = vcvt.s32.f32 %v261
    %v264 = vld [vmem:[%s0] sm:$0xf]
    %v265 = vld [vmem:[%s0 + $0x4] sm:$0xf]
    %v266 = vld [vmem:[#allocation2] sm:$0xff]
    %v267 = vld [vmem:[#allocation2 + $0x8] sm:$0xff]
    %v268 = vld [vmem:[#allocation3] sm:$0xff]
    %v269 = vld [vmem:[#allocation3 + $0x8] sm:$0xff]
    %v270 = vpack.c.bf16 %v267, %v266
    %v273 = vunpack.c.l.b16 %v264
    %v274 = vunpack.c.l.b16 %v265
    %v275 = vpack.c.b16 %v274, %v273
    %277 = vxpose.xlu0.c.b16.start [1/8] %v275, 128
    %278 = vxpose.xlu0.c.b16.cont [2/8] 0, 128
    %279 = vxpose.xlu0.c.b16.cont [3/8] 0, 128
    %280 = vxpose.xlu0.c.b16.cont [4/8] 0, 128
    %281 = vxpose.xlu0.c.b16.cont [5/8] 0, 128
    %282 = vxpose.xlu0.c.b16.cont [6/8] 0, 128
    %283 = vxpose.xlu0.c.b16.cont [7/8] 0, 128
    %284 = vxpose.xlu0.c.b16.end [8/8] 0, 128
    %v285 = vpop.trf.xlu0
    %v286 = vpop.trf.xlu0
    %v287 = vpop.trf.xlu0
    %v288 = vpop.trf.xlu0
    %v289 = vpop.trf.xlu0
    %v290 = vpop.trf.xlu0
    %v291 = vpop.trf.xlu0
    %v292 = vpop.trf.xlu0
    %v294 = vsel %vm130, %v285, 0
    %296 = vmatprep.subr.bf16.mxu0 0
    %297 = vmatpush1.bf16.msra.mxu0 %v270
    %298 = vmatprep.subr.bf16.mxu0 0
    %299 = vmatpush1.bf16.msra.mxu0 0
    %300 = vmatprep.subr.bf16.mxu0 0
    %301 = vmatpush1.bf16.msra.mxu0 0
    %302 = vmatprep.subr.bf16.mxu0 0
    %303 = vmatpush1.bf16.msra.mxu0 0
    %304 = vmatprep.subr.bf16.mxu0 0
    %305 = vmatpush1.bf16.msra.mxu0 0
    %306 = vmatprep.subr.bf16.mxu0 0
    %307 = vmatpush1.bf16.msra.mxu0 0
    %308 = vmatprep.subr.bf16.mxu0 0
    %309 = vmatpush1.bf16.msra.mxu0 0
    %310 = vmatprep.subr.bf16.mxu0 0
    %311 = vmatpush1.bf16.msra.mxu0 0
    %312 = vmatprep.subr.bf16.mxu0 0
    %313 = vmatpush1.bf16.msra.mxu0 0
    %314 = vmatprep.subr.bf16.mxu0 0
    %315 = vmatpush1.bf16.msra.mxu0 0
    %316 = vmatprep.subr.bf16.mxu0 0
    %317 = vmatpush1.bf16.msra.mxu0 0
    %318 = vmatprep.subr.bf16.mxu0 0
    %319 = vmatpush1.bf16.msra.mxu0 0
    %320 = vmatprep.subr.bf16.mxu0 0
    %321 = vmatpush1.bf16.msra.mxu0 0
    %322 = vmatprep.subr.bf16.mxu0 0
    %323 = vmatpush1.bf16.msra.mxu0 0
    %324 = vmatprep.subr.bf16.mxu0 0
    %325 = vmatpush1.bf16.msra.mxu0 0
    %326 = vmatprep.subr.bf16.mxu0 0
    %327 = vmatpush1.bf16.msra.mxu0 0
    %328 = vmatprep.mubr.bf16.mxu0 0
    %329 = vmatmul.mubr.bf16.gmra.mrb[0].mxu0 %v294
    %v330 = vpop.f32.mrb[0].mxu0
    %v331 = vadd.f32 %v266, %v330
    %v332 = vpop.f32.mrb[0].mxu0
    %v333 = vpop.f32.mrb[0].mxu0
    %v334 = vadd.f32 %v267, %v333
    %v335 = vpop.f32.mrb[0].mxu0
    %336 = vdwg.mxu0
    %338 = vset.pattern.permute.xlu0 0
    %339 = vperm.xlu0 %338, %v268
    %v340 = vpop.permute.xlu0 %339
    %343 = vset.pattern.permute.xlu0 0
    %344 = vperm.xlu0 %343, %v269
    %v345 = vpop.permute.xlu0 %344
    %v347 = vmul.f32 %v340, %v331
    %v348 = vmul.f32 %v345, %v334
    %v349 = vadd.f32 %v347, %v241
    %v350 = vadd.f32 %v348, %v241
    %v352 = vsel %vm226, %v349, 0
    %v355 = vsel %vm226, %v350, 0
    %357 = vmatprep.subr.mxu0 0.0
    %358 = vmatpush1.msra.mxu0 %v256
    %359 = vmatprep.subr.mxu0 0.0
    %360 = vmatpush1.msra.mxu0 0.0
    %361 = vmatprep.subr.mxu0 0.0
    %362 = vmatpush1.msra.mxu0 0.0
    %363 = vmatprep.subr.mxu0 0.0
    %364 = vmatpush1.msra.mxu0 0.0
    %365 = vmatprep.subr.mxu0 0.0
    %366 = vmatpush1.msra.mxu0 0.0
    %367 = vmatprep.subr.mxu0 0.0
    %368 = vmatpush1.msra.mxu0 0.0
    %369 = vmatprep.subr.mxu0 0.0
    %370 = vmatpush1.msra.mxu0 0.0
    %371 = vmatprep.subr.mxu0 0.0
    %372 = vmatpush1.msra.mxu0 0.0
    %373 = vmatprep.subr.mxu0 0.0
    %374 = vmatpush1.msra.mxu0 0.0
    %375 = vmatprep.subr.mxu0 0.0
    %376 = vmatpush1.msra.mxu0 0.0
    %377 = vmatprep.subr.mxu0 0.0
    %378 = vmatpush1.msra.mxu0 0.0
    %379 = vmatprep.subr.mxu0 0.0
    %380 = vmatpush1.msra.mxu0 0.0
    %381 = vmatprep.subr.mxu0 0.0
    %382 = vmatpush1.msra.mxu0 0.0
    %383 = vmatprep.subr.mxu0 0.0
    %384 = vmatpush1.msra.mxu0 0.0
    %385 = vmatprep.subr.mxu0 0.0
    %386 = vmatpush1.msra.mxu0 0.0
    %387 = vmatprep.subr.mxu0 0.0
    %388 = vmatpush1.msra.mxu0 0.0
    %389 = vmatprep.subr.mxu0 0.0
    %390 = vmatpush1.msra.mxu0 0.0
    %391 = vmatprep.subr.mxu0 0.0
    %392 = vmatpush1.msra.mxu0 0.0
    %393 = vmatprep.subr.mxu0 0.0
    %394 = vmatpush1.msra.mxu0 0.0
    %395 = vmatprep.subr.mxu0 0.0
    %396 = vmatpush1.msra.mxu0 0.0
    %397 = vmatprep.subr.mxu0 0.0
    %398 = vmatpush1.msra.mxu0 0.0
    %399 = vmatprep.subr.mxu0 0.0
    %400 = vmatpush1.msra.mxu0 0.0
    %401 = vmatprep.subr.mxu0 0.0
    %402 = vmatpush1.msra.mxu0 0.0
    %403 = vmatprep.subr.mxu0 0.0
    %404 = vmatpush1.msra.mxu0 0.0
    %405 = vmatprep.subr.mxu0 0.0
    %406 = vmatpush1.msra.mxu0 0.0
    %407 = vmatprep.subr.mxu0 0.0
    %408 = vmatpush1.msra.mxu0 0.0
    %409 = vmatprep.subr.mxu0 0.0
    %410 = vmatpush1.msra.mxu0 0.0
    %411 = vmatprep.subr.mxu0 0.0
    %412 = vmatpush1.msra.mxu0 0.0
    %413 = vmatprep.subr.mxu0 0.0
    %414 = vmatpush1.msra.mxu0 0.0
    %415 = vmatprep.subr.mxu0 0.0
    %416 = vmatpush1.msra.mxu0 0.0
    %417 = vmatprep.subr.mxu0 0.0
    %418 = vmatpush1.msra.mxu0 0.0
    %419 = vmatprep.subr.mxu0 0.0
    %420 = vmatpush1.msra.mxu0 0.0
    %421 = vmatprep.mubr.f32.mxu0 0.0
    %422 = vmatmul.mubr.f32.gmra.mrb[0].mxu0 %v352
    %v423 = vpop.f32.mrb[0].mxu0
    %v424 = vadd.f32 0.0, %v423
    %v425 = vpop.f32.mrb[0].mxu0
    %426 = vmatprep.mubr.f32.mxu0 0.0
    %427 = vmatmul.mubr.f32.gmra.mrb[0].mxu0 %v355
    %v428 = vpop.f32.mrb[0].mxu0
    %v429 = vadd.f32 0.0, %v428
    %v430 = vpop.f32.mrb[0].mxu0
    %431 = vdwg.mxu0
    %v432 = vmul.f32 %v424, %v262
    %v433 = vmul.f32 %v429, %v263
    %v434 = vadd.f32 %v432, %v433
    %v435 = vrot.slane %v434, 4
    %v436 = vadd.f32 %v434, %v435
    %v437 = vrot.slane %v436, 2
    %v438 = vadd.f32 %v436, %v437
    %v439 = vrot.slane %v438, 1
    %v440 = vadd.f32 %v438, %v439
    %441 = vst [vmem:[#allocation4] sm:$0x1] %v440
    %s442 = scalar_lea.vmem %s0, 8
    %v443 = vld [vmem:[%s442] sm:$0xf]
    %v444 = vld [vmem:[%s442 + $0x4] sm:$0xf]
    %v445 = vld [vmem:[#allocation2 + $0x10] sm:$0xff]
    %v446 = vld [vmem:[#allocation2 + $0x18] sm:$0xff]
    %v447 = vld [vmem:[#allocation3 + $0x10] sm:$0xff]
    %v448 = vld [vmem:[#allocation3 + $0x18] sm:$0xff]
    %v449 = vpack.c.bf16 %v446, %v445
    %v452 = vunpack.c.l.b16 %v443
    %v453 = vunpack.c.l.b16 %v444
    %v454 = vpack.c.b16 %v453, %v452
    %456 = vxpose.xlu0.c.b16.start [1/8] %v454, 128
    %457 = vxpose.xlu0.c.b16.cont [2/8] 0, 128
    %458 = vxpose.xlu0.c.b16.cont [3/8] 0, 128
    %459 = vxpose.xlu0.c.b16.cont [4/8] 0, 128
    %460 = vxpose.xlu0.c.b16.cont [5/8] 0, 128
    %461 = vxpose.xlu0.c.b16.cont [6/8] 0, 128
    %462 = vxpose.xlu0.c.b16.cont [7/8] 0, 128
    %463 = vxpose.xlu0.c.b16.end [8/8] 0, 128
    %v464 = vpop.trf.xlu0
    %v465 = vpop.trf.xlu0
    %v466 = vpop.trf.xlu0
    %v467 = vpop.trf.xlu0
    %v468 = vpop.trf.xlu0
    %v469 = vpop.trf.xlu0
    %v470 = vpop.trf.xlu0
    %v471 = vpop.trf.xlu0
    %v473 = vsel %vm130, %v464, 0
    %475 = vmatprep.subr.bf16.mxu0 0
    %476 = vmatpush1.bf16.msra.mxu0 %v449
    %477 = vmatprep.subr.bf16.mxu0 0
    %478 = vmatpush1.bf16.msra.mxu0 0
    %479 = vmatprep.subr.bf16.mxu0 0
    %480 = vmatpush1.bf16.msra.mxu0 0
    %481 = vmatprep.subr.bf16.mxu0 0
    %482 = vmatpush1.bf16.msra.mxu0 0
    %483 = vmatprep.subr.bf16.mxu0 0
    %484 = vmatpush1.bf16.msra.mxu0 0
    %485 = vmatprep.subr.bf16.mxu0 0
    %486 = vmatpush1.bf16.msra.mxu0 0
    %487 = vmatprep.subr.bf16.mxu0 0
    %488 = vmatpush1.bf16.msra.mxu0 0
    %489 = vmatprep.subr.bf16.mxu0 0
    %490 = vmatpush1.bf16.msra.mxu0 0
    %491 = vmatprep.subr.bf16.mxu0 0
    %492 = vmatpush1.bf16.msra.mxu0 0
    %493 = vmatprep.subr.bf16.mxu0 0
    %494 = vmatpush1.bf16.msra.mxu0 0
    %495 = vmatprep.subr.bf16.mxu0 0
    %496 = vmatpush1.bf16.msra.mxu0 0
    %497 = vmatprep.subr.bf16.mxu0 0
    %498 = vmatpush1.bf16.msra.mxu0 0
    %499 = vmatprep.subr.bf16.mxu0 0
    %500 = vmatpush1.bf16.msra.mxu0 0
    %501 = vmatprep.subr.bf16.mxu0 0
    %502 = vmatpush1.bf16.msra.mxu0 0
    %503 = vmatprep.subr.bf16.mxu0 0
    %504 = vmatpush1.bf16.msra.mxu0 0
    %505 = vmatprep.subr.bf16.mxu0 0
    %506 = vmatpush1.bf16.msra.mxu0 0
    %507 = vmatprep.mubr.bf16.mxu0 0
    %508 = vmatmul.mubr.bf16.gmra.mrb[0].mxu0 %v473
    %v509 = vpop.f32.mrb[0].mxu0
    %v510 = vadd.f32 %v445, %v509
    %v511 = vpop.f32.mrb[0].mxu0
    %v512 = vpop.f32.mrb[0].mxu0
    %v513 = vadd.f32 %v446, %v512
    %v514 = vpop.f32.mrb[0].mxu0
    %515 = vdwg.mxu0
    %517 = vset.pattern.permute.xlu0 0
    %518 = vperm.xlu0 %517, %v447
    %v519 = vpop.permute.xlu0 %518
    %522 = vset.pattern.permute.xlu0 0
    %523 = vperm.xlu0 %522, %v448
    %v524 = vpop.permute.xlu0 %523
    %v526 = vmul.f32 %v519, %v510
    %v527 = vmul.f32 %v524, %v513
    %v528 = vadd.f32 %v526, %v241
    %v529 = vadd.f32 %v527, %v241
    %v531 = vsel %vm226, %v528, 0
    %v534 = vsel %vm226, %v529, 0
    %536 = vmatprep.subr.mxu0 0.0
    %537 = vmatpush1.msra.mxu0 %v256
    %538 = vmatprep.subr.mxu0 0.0
    %539 = vmatpush1.msra.mxu0 0.0
    %540 = vmatprep.subr.mxu0 0.0
    %541 = vmatpush1.msra.mxu0 0.0
    %542 = vmatprep.subr.mxu0 0.0
    %543 = vmatpush1.msra.mxu0 0.0
    %544 = vmatprep.subr.mxu0 0.0
    %545 = vmatpush1.msra.mxu0 0.0
    %546 = vmatprep.subr.mxu0 0.0
    %547 = vmatpush1.msra.mxu0 0.0
    %548 = vmatprep.subr.mxu0 0.0
    %549 = vmatpush1.msra.mxu0 0.0
    %550 = vmatprep.subr.mxu0 0.0
    %551 = vmatpush1.msra.mxu0 0.0
    %552 = vmatprep.subr.mxu0 0.0
    %553 = vmatpush1.msra.mxu0 0.0
    %554 = vmatprep.subr.mxu0 0.0
    %555 = vmatpush1.msra.mxu0 0.0
    %556 = vmatprep.subr.mxu0 0.0
    %557 = vmatpush1.msra.mxu0 0.0
    %558 = vmatprep.subr.mxu0 0.0
    %559 = vmatpush1.msra.mxu0 0.0
    %560 = vmatprep.subr.mxu0 0.0
    %561 = vmatpush1.msra.mxu0 0.0
    %562 = vmatprep.subr.mxu0 0.0
    %563 = vmatpush1.msra.mxu0 0.0
    %564 = vmatprep.subr.mxu0 0.0
    %565 = vmatpush1.msra.mxu0 0.0
    %566 = vmatprep.subr.mxu0 0.0
    %567 = vmatpush1.msra.mxu0 0.0
    %568 = vmatprep.subr.mxu0 0.0
    %569 = vmatpush1.msra.mxu0 0.0
    %570 = vmatprep.subr.mxu0 0.0
    %571 = vmatpush1.msra.mxu0 0.0
    %572 = vmatprep.subr.mxu0 0.0
    %573 = vmatpush1.msra.mxu0 0.0
    %574 = vmatprep.subr.mxu0 0.0
    %575 = vmatpush1.msra.mxu0 0.0
    %576 = vmatprep.subr.mxu0 0.0
    %577 = vmatpush1.msra.mxu0 0.0
    %578 = vmatprep.subr.mxu0 0.0
    %579 = vmatpush1.msra.mxu0 0.0
    %580 = vmatprep.subr.mxu0 0.0
    %581 = vmatpush1.msra.mxu0 0.0
    %582 = vmatprep.subr.mxu0 0.0
    %583 = vmatpush1.msra.mxu0 0.0
    %584 = vmatprep.subr.mxu0 0.0
    %585 = vmatpush1.msra.mxu0 0.0
    %586 = vmatprep.subr.mxu0 0.0
    %587 = vmatpush1.msra.mxu0 0.0
    %588 = vmatprep.subr.mxu0 0.0
    %589 = vmatpush1.msra.mxu0 0.0
    %590 = vmatprep.subr.mxu0 0.0
    %591 = vmatpush1.msra.mxu0 0.0
    %592 = vmatprep.subr.mxu0 0.0
    %593 = vmatpush1.msra.mxu0 0.0
    %594 = vmatprep.subr.mxu0 0.0
    %595 = vmatpush1.msra.mxu0 0.0
    %596 = vmatprep.subr.mxu0 0.0
    %597 = vmatpush1.msra.mxu0 0.0
    %598 = vmatprep.subr.mxu0 0.0
    %599 = vmatpush1.msra.mxu0 0.0
    %600 = vmatprep.mubr.f32.mxu0 0.0
    %601 = vmatmul.mubr.f32.gmra.mrb[0].mxu0 %v531
    %v602 = vpop.f32.mrb[0].mxu0
    %v603 = vadd.f32 0.0, %v602
    %v604 = vpop.f32.mrb[0].mxu0
    %605 = vmatprep.mubr.f32.mxu0 0.0
    %606 = vmatmul.mubr.f32.gmra.mrb[0].mxu0 %v534
    %v607 = vpop.f32.mrb[0].mxu0
    %v608 = vadd.f32 0.0, %v607
    %v609 = vpop.f32.mrb[0].mxu0
    %610 = vdwg.mxu0
    %v611 = vmul.f32 %v603, %v262
    %v612 = vmul.f32 %v608, %v263
    %v613 = vadd.f32 %v611, %v612
    %v614 = vrot.slane %v613, 4
    %v615 = vadd.f32 %v613, %v614
    %v616 = vrot.slane %v615, 2
    %v617 = vadd.f32 %v615, %v616
    %v618 = vrot.slane %v617, 1
    %v619 = vadd.f32 %v617, %v618
    %620 = vst [vmem:[#allocation4 + $0x1] sm:$0x1] %v619
    // Predicated region
    $region22: #{tpu_custom_call.1} parent=1 // pred_check
      _
    $region23: #{tpu_custom_call.1} parent=1 // pred_check_branch
      %622 = sbr.rel (0) target = $region25
    $region24: #{tpu_custom_call.1} parent=1 // pred_region
      %s624 = ssub.s32 32, 32
      %625 = vsyncadd [#allocation5], %s624
      %s627 = sshll.u32 [#allocation4], 4
      %s628 = int_to_ptr.vmem [resolvable:$true] %s627
      %630 = dma.vmem_to_hbm [thread:$0]  %s628, 32, %s5, [#allocation5]
    $region25: #{tpu_custom_call.1} parent=1 // pred_fallthru
      _
    // Predicated region
    $region26: #{tpu_custom_call.1} parent=1 // pred_check
      _
    $region27: #{tpu_custom_call.1} parent=1 // pred_check_branch
      %632 = sbr.rel (0) target = $region29
    $region28: #{tpu_custom_call.1} parent=1 // pred_region
      %633 = dma.done [#allocation5], 32
    $region29: #{tpu_custom_call.1} parent=1 // pred_fallthru
      _
    %634 = vsyncpa [#allocation5], 1

</llo_original>
